<compile_context>
chip_gen: v5e
topology: v5e:2x2
jax: 0.10.0
libtpu: 0.0.40
codegen_flags: <defaults>
</compile_context>

<pallas_src>
import functools

import jax
import jax.numpy as jnp
from jax import lax
from jax.experimental import pallas as pl
from jax.experimental.pallas import tpu as pltpu


def _pick_tile(n, candidates):
    """Largest candidate tile that evenly divides n, else n (full extent)."""
    for c in candidates:
        if n % c == 0:
            return c
    return n


def _masked_conv1d_kernel(x_ref, halo_ref, w_ref, b_ref, m_ref, out_ref, *,
                          K, pad, tT):
    # x_ref    : (1, C_in, tT)              time tile of the *unpadded* input
    # halo_ref : (1, 1, C_in, max(2p,1))    [left | right] halo columns
    # w_ref    : (tCo, K*C_in)              im2col-folded weights (tap-major)
    # b_ref    : (tCo, 1)                   bias (lane broadcast over time)
    # m_ref    : (1, 1, tT)                 float mask tile
    # out_ref  : (1, tCo, tT)
    xb = x_ref[0]                                         # (C_in, tT)
    if pad > 0:
        hl = halo_ref[0, 0]                               # (C_in, 2*pad)
        xw = jnp.concatenate([hl[:, :pad], xb, hl[:, pad:]], axis=-1)
    else:
        xw = xb                                           # (C_in, tT + 2*pad)

    # im2col: row block k holds the window shifted by tap k. The per-tap lane
    # shift is inherent to conv-as-matmul; it is XLU/copy work that overlaps
    # with the single MXU matmul below (deep K*C_in contraction).
    if K > 1:
        p = jnp.concatenate([xw[:, k:k + tT] for k in range(K)], axis=0)
    else:
        p = xw                                            # (K*C_in, tT)

    acc = jnp.dot(w_ref[...], p, preferred_element_type=jnp.float32)  # (tCo,tT)
    acc = acc + b_ref[...]                                # (tCo,1) lane bcast
    acc = acc * m_ref[0]                                  # (1,tT) sublane bcast
    out_ref[0] = acc.astype(out_ref.dtype)


def masked_conv1d(x, mask, weight, bias, *, kernel_size, stride=1,
                  compute_dtype=jnp.bfloat16, t_tile=None, co_tile=None):
    """Pallas MaskedConv1D forward.

    x:      (B, C_in, T) float
    mask:   (B, 1, T) bool
    weight: (C_out, C_in, K)  (PyTorch Conv1d layout)
    bias:   (C_out,)
    Returns (out_conv (B, C_out, T) in x.dtype, out_mask (B, 1, T) bool).
    """
    assert kernel_size % 2 == 1
    assert stride == 1, "only stride=1 implemented in the Pallas kernel"
    B, C_in, T = x.shape
    assert T % stride == 0
    C_out, C_in_w, K = weight.shape
    assert C_in_w == C_in and K == kernel_size
    pad = K // 2

    # Tile sizes: lane-dense multiples of 128 over T (full T as fallback for
    # awkward lengths); C_out only tiled when large so weight stays resident.
    tT = t_tile if t_tile is not None else _pick_tile(T, (512, 384, 256, 128))
    assert T % tT == 0, "t_tile must divide T"
    if co_tile is not None:
        tCo = co_tile
    else:
        tCo = C_out if C_out <= 512 else _pick_tile(C_out, (512, 256, 128))
    assert C_out % tCo == 0, "co_tile must divide C_out"
    nT, nCo = T // tT, C_out // tCo

    cdt = compute_dtype
    x_c = x.astype(cdt)
    # Fold taps into the contraction: w2[co, k*C_in + ci] = weight[co, ci, k].
    w2 = jnp.transpose(weight, (0, 2, 1)).reshape(C_out, K * C_in).astype(cdt)
    b2 = bias.reshape(C_out, 1).astype(jnp.float32)       # (C_out, 1)
    m_f = mask.astype(jnp.float32)                        # (B, 1, T)

    # Halo side-band: for each time tile, the pad columns immediately to its
    # left/right (zeros at the sequence edges). Tiny vs. a full padded copy.
    H = max(2 * pad, 1)
    if pad > 0 and nT > 1:
        xr = x_c.reshape(B, C_in, nT, tT)
        z = jnp.zeros((B, C_in, 1, pad), cdt)
        left = jnp.concatenate([z, xr[:, :, :-1, tT - pad:]], axis=2)
        right = jnp.concatenate([xr[:, :, 1:, :pad], z], axis=2)
        halo = jnp.transpose(jnp.concatenate([left, right], axis=-1),
                             (0, 2, 1, 3))                # (B, nT, C_in, 2p)
    else:
        halo = jnp.zeros((B, nT, C_in, H), cdt)           # edge tiles: zero pad

    kernel = functools.partial(_masked_conv1d_kernel, K=K, pad=pad, tT=tT)
    out_conv = pl.pallas_call(
        kernel,
        out_shape=jax.ShapeDtypeStruct((B, C_out, T), x.dtype),
        grid_spec=pltpu.PrefetchScalarGridSpec(
            num_scalar_prefetch=0,
            grid=(B, nCo, nT),
            in_specs=[
                pl.BlockSpec((1, C_in, tT), lambda b, co, t: (b, 0, t)),
                pl.BlockSpec((1, 1, C_in, H), lambda b, co, t: (b, t, 0, 0)),
                pl.BlockSpec((tCo, K * C_in), lambda b, co, t: (co, 0)),
                pl.BlockSpec((tCo, 1), lambda b, co, t: (co, 0)),
                pl.BlockSpec((1, 1, tT), lambda b, co, t: (b, 0, t)),
            ],
            out_specs=pl.BlockSpec((1, tCo, tT), lambda b, co, t: (b, co, t)),
        ),
        compiler_params=pltpu.CompilerParams(
            dimension_semantics=("parallel", "parallel", "parallel"),
            vmem_limit_bytes=64 * 1024 * 1024,
        ),
    )(x_c, halo, w2, b2, m_f)

    # For stride == 1 the output mask is just the input mask (as bool).
    out_mask = mask.astype(jnp.bool_)
    return out_conv, out_mask


def _reference_masked_conv1d(x, mask, weight, bias, *, kernel_size, stride=1,
                             compute_dtype=jnp.bfloat16):
    # Reference uses the same bf16-quantized inputs with f32 math, so only
    # accumulation-order differences remain vs. the kernel.
    pad = kernel_size // 2
    xq = x.astype(compute_dtype).astype(jnp.float32)
    wq = weight.astype(compute_dtype).astype(jnp.float32)
    out = lax.conv_general_dilated(
        xq, wq,
        window_strides=(stride,),
        padding=[(pad, pad)],
        dimension_numbers=("NCH", "OIH", "NCH"),
    ) + bias[None, :, None].astype(jnp.float32)
    out = (out * mask.astype(jnp.float32)).astype(x.dtype)
    return out, mask.astype(jnp.bool_)


if __name__ == "__main__":
    key = jax.random.PRNGKey(0)
    B, C_in, C_out, T, K = 2, 16, 16, 256, 3

    kx, kw, kb = jax.random.split(key, 3)
    x = jax.random.normal(kx, (B, C_in, T), dtype=jnp.float32)

    # PyTorch-like fan-in bound for the conv weight; small random bias to
    # exercise the bias path (module inits bias to 0, but it is a parameter).
    bound = 1.0 / (C_in * K) ** 0.5
    weight = jax.random.uniform(kw, (C_out, C_in, K), dtype=jnp.float32,
                                minval=-bound, maxval=bound)
    bias = jax.random.uniform(kb, (C_out,), dtype=jnp.float32,
                              minval=-bound, maxval=bound)

    # Valid-length mask: batch 0 has 160 valid steps (crosses a tile boundary),
    # batch 1 all 256.
    lengths = jnp.array([160, 256])
    mask = (jnp.arange(T)[None, None, :] < lengths[:, None, None])  # (B,1,T)

    # t_tile=128 -> 2 time tiles per batch, exercising the halo path.
    out_conv, out_mask = masked_conv1d(x, mask, weight, bias,
                                       kernel_size=K, stride=1, t_tile=128)
    out_conv = jax.block_until_ready(out_conv)
    out_mask = jax.block_until_ready(out_mask)

    ref_conv, ref_mask = _reference_masked_conv1d(x, mask, weight, bias,
                                                  kernel_size=K, stride=1)
    assert out_conv.shape == (B, C_out, T) and out_mask.shape == (B, 1, T)
    assert out_conv.dtype == x.dtype and out_mask.dtype == jnp.bool_
    assert jnp.allclose(out_conv, ref_conv, atol=1e-4, rtol=1e-4)
    assert jnp.array_equal(out_mask, ref_mask)
    print("KERNEL_OK")
</pallas_src>

<mosaic_0001>
module attributes {stable_mosaic.version = 11 : i64} {
  func.func @_masked_conv1d_kernel(%arg0: i32, %arg1: i32, %arg2: i32, %arg3: memref<1x16x128xbf16, #tpu.memory_space<vmem>>, %arg4: memref<1x1x16x2xbf16, #tpu.memory_space<vmem>>, %arg5: memref<16x48xbf16, #tpu.memory_space<vmem>>, %arg6: memref<16x1xf32, #tpu.memory_space<vmem>>, %arg7: memref<1x1x128xf32, #tpu.memory_space<vmem>>, %arg8: memref<1x16x128xf32, #tpu.memory_space<vmem>>) attributes {dimension_semantics = [#tpu.dimension_semantics<parallel>, #tpu.dimension_semantics<parallel>, #tpu.dimension_semantics<parallel>], iteration_bounds = array<i64: 2, 1, 2>, scalar_prefetch = 0 : i64, scratch_operands = 0 : i64, tpu.core_type = #tpu.core_type<tc>, window_params = [{transform_indices = @transform_0, window_bounds = array<i64: 1, 16, 128>}, {transform_indices = @transform_1, window_bounds = array<i64: 1, 1, 16, 2>}, {transform_indices = @transform_2, window_bounds = array<i64: 16, 48>}, {transform_indices = @transform_3, window_bounds = array<i64: 16, 1>}, {transform_indices = @transform_4, window_bounds = array<i64: 1, 1, 128>}, {transform_indices = @transform_5, window_bounds = array<i64: 1, 16, 128>}]} {
    %c0 = arith.constant 0 : index
    %c0_0 = arith.constant 0 : index
    %c0_1 = arith.constant 0 : index
    %0 = vector.load %arg3[%c0, %c0_0, %c0_1] : memref<1x16x128xbf16, #tpu.memory_space<vmem>>, vector<1x16x128xbf16>
    %1 = vector.shape_cast %0 : vector<1x16x128xbf16> to vector<16x128xbf16>
    %c0_2 = arith.constant 0 : index
    %c0_3 = arith.constant 0 : index
    %c0_4 = arith.constant 0 : index
    %c0_5 = arith.constant 0 : index
    %2 = vector.load %arg4[%c0_2, %c0_3, %c0_4, %c0_5] : memref<1x1x16x2xbf16, #tpu.memory_space<vmem>>, vector<1x1x16x2xbf16>
    %3 = vector.shape_cast %2 : vector<1x1x16x2xbf16> to vector<16x2xbf16>
    %4 = vector.extract_strided_slice %3 {offsets = [0, 0], sizes = [16, 1], strides = [1, 1]} : vector<16x2xbf16> to vector<16x1xbf16>
    %5 = vector.extract_strided_slice %3 {offsets = [0, 1], sizes = [16, 1], strides = [1, 1]} : vector<16x2xbf16> to vector<16x1xbf16>
    %6 = tpu.concatenate %4, %1, %5 in 1 : vector<16x1xbf16>, vector<16x128xbf16>, vector<16x1xbf16> -> vector<16x130xbf16>
    %7 = vector.extract_strided_slice %6 {offsets = [0, 0], sizes = [16, 128], strides = [1, 1]} : vector<16x130xbf16> to vector<16x128xbf16>
    %8 = vector.extract_strided_slice %6 {offsets = [0, 1], sizes = [16, 128], strides = [1, 1]} : vector<16x130xbf16> to vector<16x128xbf16>
    %9 = vector.extract_strided_slice %6 {offsets = [0, 2], sizes = [16, 128], strides = [1, 1]} : vector<16x130xbf16> to vector<16x128xbf16>
    %10 = tpu.concatenate %7, %8, %9 in 0 : vector<16x128xbf16>, vector<16x128xbf16>, vector<16x128xbf16> -> vector<48x128xbf16>
    %c0_6 = arith.constant 0 : index
    %c0_7 = arith.constant 0 : index
    %11 = vector.load %arg5[%c0_6, %c0_7] : memref<16x48xbf16, #tpu.memory_space<vmem>>, vector<16x48xbf16>
    %cst = arith.constant dense<0.000000e+00> : vector<16x128xf32>
    %12 = tpu.matmul %11, %10, %cst {dimension_numbers = #tpu.dot_dimension_numbers<[1], [0], [0], [1], [0, 0, 1, 1], [], []>} : vector<16x48xbf16>, vector<48x128xbf16>, vector<16x128xf32> -> vector<16x128xf32>
    %c0_8 = arith.constant 0 : index
    %c0_9 = arith.constant 0 : index
    %13 = vector.load %arg6[%c0_8, %c0_9] : memref<16x1xf32, #tpu.memory_space<vmem>>, vector<16x1xf32>
    %14 = vector.broadcast %13 : vector<16x1xf32> to vector<16x128xf32>
    %15 = arith.addf %12, %14 : vector<16x128xf32>
    %c0_10 = arith.constant 0 : index
    %c0_11 = arith.constant 0 : index
    %c0_12 = arith.constant 0 : index
    %16 = vector.load %arg7[%c0_10, %c0_11, %c0_12] : memref<1x1x128xf32, #tpu.memory_space<vmem>>, vector<1x1x128xf32>
    %17 = vector.shape_cast %16 : vector<1x1x128xf32> to vector<1x128xf32>
    %18 = vector.broadcast %17 : vector<1x128xf32> to vector<16x128xf32>
    %19 = arith.mulf %15, %18 : vector<16x128xf32>
    %c0_13 = arith.constant 0 : index
    %c0_14 = arith.constant 0 : index
    %c0_15 = arith.constant 0 : index
    %20 = vector.load %arg8[%c0_13, %c0_14, %c0_15] : memref<1x16x128xf32, #tpu.memory_space<vmem>>, vector<1x16x128xf32>
    %21 = vector.shape_cast %20 : vector<1x16x128xf32> to vector<16x128xf32>
    %22 = vector.shape_cast %19 : vector<16x128xf32> to vector<1x16x128xf32>
    tpu.vector_store %arg8[%c0_13, %c0_14, %c0_15], %22 {strides = array<i32>} : memref<1x16x128xf32, #tpu.memory_space<vmem>>, vector<1x16x128xf32>,
    return
  }
  func.func @transform_0(%arg0: i32, %arg1: i32, %arg2: i32) -> (i32, i32, i32) {
    %c0_i32 = arith.constant 0 : i32
    %c0_i32_0 = arith.constant 0 : i32
    return %arg0, %c0_i32, %arg2 : i32, i32, i32
  }
  func.func @transform_1(%arg0: i32, %arg1: i32, %arg2: i32) -> (i32, i32, i32, i32) {
    %c0_i32 = arith.constant 0 : i32
    %c0_i32_0 = arith.constant 0 : i32
    %c0_i32_1 = arith.constant 0 : i32
    return %arg0, %arg2, %c0_i32, %c0_i32_0 : i32, i32, i32, i32
  }
  func.func @transform_2(%arg0: i32, %arg1: i32, %arg2: i32) -> (i32, i32) {
    %c0_i32 = arith.constant 0 : i32
    %c0_i32_0 = arith.constant 0 : i32
    return %arg1, %c0_i32 : i32, i32
  }
  func.func @transform_3(%arg0: i32, %arg1: i32, %arg2: i32) -> (i32, i32) {
    %c0_i32 = arith.constant 0 : i32
    %c0_i32_0 = arith.constant 0 : i32
    return %arg1, %c0_i32 : i32, i32
  }
  func.func @transform_4(%arg0: i32, %arg1: i32, %arg2: i32) -> (i32, i32, i32) {
    %c0_i32 = arith.constant 0 : i32
    %c0_i32_0 = arith.constant 0 : i32
    return %arg0, %c0_i32, %arg2 : i32, i32, i32
  }
  func.func @transform_5(%arg0: i32, %arg1: i32, %arg2: i32) -> (i32, i32, i32) {
    %c0_i32 = arith.constant 0 : i32
    return %arg0, %arg1, %arg2 : i32, i32, i32
  }
}

</mosaic_0001>

<llo_original>
// kernel: tpu_custom_call.1
$region0: #{tpu_custom_call.1}
  #allocation0 [shape = 'u32[]', space=smem, size = 0x4, offset = 0x4, fixed_abs, tag = 'smem constant byte address 0x4 - core index']
  #allocation1 [shape = 'u32[72,128]{1,0:T(1,128)}', space=vmem, size = 0x9000, scoped, tag = 'internal scratch']
  %s0 = inlined_call_operand.vmem [shape: bf16[2,16,256], index: 0, kind: input, shape index: {}]
  %s1 = inlined_call_operand.vmem [shape: bf16[2,2,16,2], index: 1, kind: input, shape index: {}]
  %s2 = inlined_call_operand.vmem [shape: bf16[16,48], index: 2, kind: input, shape index: {}]
  %s3 = inlined_call_operand.vmem [shape: f32[16,1], index: 3, kind: input, shape index: {}]
  %s4 = inlined_call_operand.vmem [shape: f32[2,1,256], index: 4, kind: input, shape index: {}]
  %s5 = inlined_call_operand.hbm [shape: f32[2,16,256], index: 5, kind: output, shape index: {}]
  %s6 = sld [smem:[#allocation0]]
  $region94: #{tpu_custom_call.1} parent=0
    _
  %s8 = ssub.s32 1, %s6
  %s9 = scalar_select 0, %s8, %s6
  $region1: #{tpu_custom_call.1} parent=0
    #allocation2 [shape = 'u8[8192]{0}', space=vmem, size = 0x2000, scoped, tag = 'input window, operand 0']
    #allocation3 [shape = 'u8[16384]{0}', space=vmem, size = 0x4000, scoped, tag = 'output window, operand 0']
    #allocation4 [shape = 's32[2]{0}', space=sflag, size = 0x8, scoped, tag = 'scoped memory for tpu_custom_call.1']
    %10 = vsyncpa [#allocation4], 0
    %s11 = scalar_lea.sflag [#allocation4], 1
    %12 = vsyncpa %s11, 0
    loop: start=0, step=1, limit=6
    $region2: #{tpu_custom_call.1} parent=1 // loop_pre_header
      _
    $region3: #{tpu_custom_call.1} parent=1 // loop_header
      %s14 = sphi 0, %s18
      %p15 = scmp.ge.s32.totalorder %s14, 6
      %s21 = sphi 0, %s40
      %s22 = sphi 0, %s36
      %s23 = sphi 0, %s32
      %s24 = sphi 0, %s21
      %s25 = sphi 0, %s22
      %s26 = sphi 0, %s23
      %s27 = sphi 0, %s24
      %s28 = sphi 0, %s25
      %s29 = sphi 0, %s26
      %s45 = sphi 0, %s47
      %s48 = sphi 0, %s45
      %s49 = sphi 0, %s48
      %s65 = sphi 0, %s49
      %s73 = sphi 0, %s75
      %s76 = sphi 0, %s73
      %s77 = sphi 0, %s76
      %s93 = sphi 0, %s77
      %s99 = sphi 0, %s101
      %s102 = sphi 0, %s99
      %s103 = sphi 0, %s102
      %s119 = sphi 0, %s103
      %s125 = sphi 0, %s127
      %s128 = sphi 0, %s125
      %s129 = sphi 0, %s128
      %s145 = sphi 0, %s129
      %s153 = sphi 0, %s155
      %s156 = sphi 0, %s153
      %s157 = sphi 0, %s156
      %s173 = sphi 0, %s157
      %s183 = sphi 0, %s185
      %s186 = sphi 0, %s183
      %s187 = sphi 0, %s186
      %s203 = sphi 0, %s187
    $region4: #{tpu_custom_call.1} parent=1 // loop_header_branch
      %17 = sbr.rel (%p15) target = $region8
    $region5: #{tpu_custom_call.1} parent=1 // loop_body
      %s19 = ssub.s32 %s14, 1
      %s20 = ssub.s32 %s14, 2
      %s30 = sadd.s32 1, %s23
      %p31 = scmp.ge.s32.totalorder %s30, 2
      %s32 = scalar_select %p31, 0, %s30
      %s33 = sadd.s32 1, %s22
      %s34 = scalar_select %p31, %s33, %s22
      %p35 = scmp.ge.s32.totalorder %s34, 1
      %s36 = scalar_select %p35, 0, %s34
      %s37 = sadd.s32 1, %s21
      %s38 = scalar_select %p35, %s37, %s21
      %p39 = scmp.ge.s32.totalorder %s38, 2
      %s40 = scalar_select %p39, 0, %s38
      %s41 = ssub.s32 %s21, %s40
      %s42 = ssub.s32 %s23, %s32
      %s43 = sor.u32 %s41, %s42
      %p44 = scmp.eq.s32.totalorder %s43, 0
      %s46 = sadd.s32 %s45, 1
      %s47 = scalar_select %p44, %s45, %s46
      %p50 = pneg %p44
      %p51 = scmp.eq.s32.totalorder %s14, 3
      %p52 = por %p50, %p51
      %p53 = scmp.ne.s32.totalorder %s45, %s48
      %p54 = scmp.eq.s32.totalorder %s14, 0
      %p55 = por %p53, %p54
      %p56 = scmp.ne.s32.totalorder %s45, %s48
      %p57 = scmp.eq.s32.totalorder %s19, 3
      %p58 = por %p56, %p57
      %p59 = scmp.ne.s32.totalorder %s48, %s49
      %p60 = scmp.eq.s32.totalorder %s19, 0
      %p61 = por %p59, %p60
      %p62 = scmp.ne.s32.totalorder %s48, %s49
      %p63 = scmp.eq.s32.totalorder %s20, 3
      %p64 = por %p62, %p63
      %p66 = scmp.ne.s32.totalorder %s49, %s65
      %p67 = scmp.eq.s32.totalorder %s20, 0
      %p68 = por %p66, %p67
      %s69 = ssub.s32 %s21, %s40
      %s70 = ssub.s32 %s23, %s32
      %s71 = sor.u32 %s69, %s70
      %p72 = scmp.eq.s32.totalorder %s71, 0
      %s74 = sadd.s32 %s73, 1
      %s75 = scalar_select %p72, %s73, %s74
      %p78 = pneg %p72
      %p79 = scmp.eq.s32.totalorder %s14, 3
      %p80 = por %p78, %p79
      %p81 = scmp.ne.s32.totalorder %s73, %s76
      %p82 = scmp.eq.s32.totalorder %s14, 0
      %p83 = por %p81, %p82
      %p84 = scmp.ne.s32.totalorder %s73, %s76
      %p85 = scmp.eq.s32.totalorder %s19, 3
      %p86 = por %p84, %p85
      %p87 = scmp.ne.s32.totalorder %s76, %s77
      %p88 = scmp.eq.s32.totalorder %s19, 0
      %p89 = por %p87, %p88
      %p90 = scmp.ne.s32.totalorder %s76, %s77
      %p91 = scmp.eq.s32.totalorder %s20, 3
      %p92 = por %p90, %p91
      %p94 = scmp.ne.s32.totalorder %s77, %s93
      %p95 = scmp.eq.s32.totalorder %s20, 0
      %p96 = por %p94, %p95
      %s97 = ssub.s32 %s22, %s36
      %p98 = scmp.eq.s32.totalorder %s97, 0
      %s100 = sadd.s32 %s99, 1
      %s101 = scalar_select %p98, %s99, %s100
      %p104 = pneg %p98
      %p105 = scmp.eq.s32.totalorder %s14, 3
      %p106 = por %p104, %p105
      %p107 = scmp.ne.s32.totalorder %s99, %s102
      %p108 = scmp.eq.s32.totalorder %s14, 0
      %p109 = por %p107, %p108
      %p110 = scmp.ne.s32.totalorder %s99, %s102
      %p111 = scmp.eq.s32.totalorder %s19, 3
      %p112 = por %p110, %p111
      %p113 = scmp.ne.s32.totalorder %s102, %s103
      %p114 = scmp.eq.s32.totalorder %s19, 0
      %p115 = por %p113, %p114
      %p116 = scmp.ne.s32.totalorder %s102, %s103
      %p117 = scmp.eq.s32.totalorder %s20, 3
      %p118 = por %p116, %p117
      %p120 = scmp.ne.s32.totalorder %s103, %s119
      %p121 = scmp.eq.s32.totalorder %s20, 0
      %p122 = por %p120, %p121
      %s123 = ssub.s32 %s22, %s36
      %p124 = scmp.eq.s32.totalorder %s123, 0
      %s126 = sadd.s32 %s125, 1
      %s127 = scalar_select %p124, %s125, %s126
      %p130 = pneg %p124
      %p131 = scmp.eq.s32.totalorder %s14, 3
      %p132 = por %p130, %p131
      %p133 = scmp.ne.s32.totalorder %s125, %s128
      %p134 = scmp.eq.s32.totalorder %s14, 0
      %p135 = por %p133, %p134
      %p136 = scmp.ne.s32.totalorder %s125, %s128
      %p137 = scmp.eq.s32.totalorder %s19, 3
      %p138 = por %p136, %p137
      %p139 = scmp.ne.s32.totalorder %s128, %s129
      %p140 = scmp.eq.s32.totalorder %s19, 0
      %p141 = por %p139, %p140
      %p142 = scmp.ne.s32.totalorder %s128, %s129
      %p143 = scmp.eq.s32.totalorder %s20, 3
      %p144 = por %p142, %p143
      %p146 = scmp.ne.s32.totalorder %s129, %s145
      %p147 = scmp.eq.s32.totalorder %s20, 0
      %p148 = por %p146, %p147
      %s149 = ssub.s32 %s21, %s40
      %s150 = ssub.s32 %s23, %s32
      %s151 = sor.u32 %s149, %s150
      %p152 = scmp.eq.s32.totalorder %s151, 0
      %s154 = sadd.s32 %s153, 1
      %s155 = scalar_select %p152, %s153, %s154
      %p158 = pneg %p152
      %p159 = scmp.eq.s32.totalorder %s14, 3
      %p160 = por %p158, %p159
      %p161 = scmp.ne.s32.totalorder %s153, %s156
      %p162 = scmp.eq.s32.totalorder %s14, 0
      %p163 = por %p161, %p162
      %p164 = scmp.ne.s32.totalorder %s153, %s156
      %p165 = scmp.eq.s32.totalorder %s19, 3
      %p166 = por %p164, %p165
      %p167 = scmp.ne.s32.totalorder %s156, %s157
      %p168 = scmp.eq.s32.totalorder %s19, 0
      %p169 = por %p167, %p168
      %p170 = scmp.ne.s32.totalorder %s156, %s157
      %p171 = scmp.eq.s32.totalorder %s20, 3
      %p172 = por %p170, %p171
      %p174 = scmp.ne.s32.totalorder %s157, %s173
      %p175 = scmp.eq.s32.totalorder %s20, 0
      %p176 = por %p174, %p175
      %s177 = ssub.s32 %s21, %s40
      %s178 = ssub.s32 %s22, %s36
      %s179 = sor.u32 %s177, %s178
      %s180 = ssub.s32 %s23, %s32
      %s181 = sor.u32 %s179, %s180
      %p182 = scmp.eq.s32.totalorder %s181, 0
      %s184 = sadd.s32 %s183, 1
      %s185 = scalar_select %p182, %s183, %s184
      %p188 = pneg %p182
      %p189 = scmp.eq.s32.totalorder %s14, 3
      %p190 = por %p188, %p189
      %p191 = scmp.ne.s32.totalorder %s183, %s186
      %p192 = scmp.eq.s32.totalorder %s14, 0
      %p193 = por %p191, %p192
      %p194 = scmp.ne.s32.totalorder %s183, %s186
      %p195 = scmp.eq.s32.totalorder %s19, 3
      %p196 = por %p194, %p195
      %p197 = scmp.ne.s32.totalorder %s186, %s187
      %p198 = scmp.eq.s32.totalorder %s19, 0
      %p199 = por %p197, %p198
      %p200 = scmp.ne.s32.totalorder %s186, %s187
      %p201 = scmp.eq.s32.totalorder %s20, 3
      %p202 = por %p200, %p201
      %p204 = scmp.ne.s32.totalorder %s187, %s203
      %p205 = scmp.eq.s32.totalorder %s20, 0
      %p206 = por %p204, %p205
      %p207 = scmp.le.s32.totalorder 1, %s14
      %p208 = scmp.lt.s32.totalorder %s14, 5
      %p209 = pnand %p207, %p208
      %p210 = pneg %p209
      // Predicated region
      $region9: #{tpu_custom_call.1} parent=5 // pred_check
        _
      $region10: #{tpu_custom_call.1} parent=5 // pred_check_branch
        %212 = sbr.rel (%p209) target = $region12
      $region11: #{tpu_custom_call.1} parent=5 // pred_region
        %s213 = ssub.s32 %s14, 1
        // Predicated region
        $region13: #{tpu_custom_call.1} parent=11 // pred_check
          %p214 = pneg %p115
        $region14: #{tpu_custom_call.1} parent=11 // pred_check_branch
          %216 = sbr.rel (%p214) target = $region16
        $region15: #{tpu_custom_call.1} parent=11 // pred_region
          %s217 = smul.u32 2, %s25
          %p218 = scmp.lt.s32.totalorder %s217, 1
          %s219 = scalar_select %p218, %s217, 1
          %s220 = smul.addr %s219, 4
          %s221 = scalar_lea.vmem %s2, %s220
          %s222 = smul.u32 2, %s25
        $region16: #{tpu_custom_call.1} parent=11 // pred_fallthru
          _
        // Predicated region
        $region17: #{tpu_custom_call.1} parent=11 // pred_check
          %p223 = pneg %p141
        $region18: #{tpu_custom_call.1} parent=11 // pred_check_branch
          %225 = sbr.rel (%p223) target = $region20
        $region19: #{tpu_custom_call.1} parent=11 // pred_region
          %s226 = smul.u32 2, %s25
          %p227 = scmp.lt.s32.totalorder %s226, 1
          %s228 = scalar_select %p227, %s226, 1
          %s229 = smul.addr %s228, 8
          %s230 = scalar_lea.vmem %s3, %s229
          %s231 = smul.u32 2, %s25
        $region20: #{tpu_custom_call.1} parent=11 // pred_fallthru
          _
      $region12: #{tpu_custom_call.1} parent=5 // pred_fallthru
        _
      %p232 = scmp.lt.s32.totalorder %s14, 4
      // Predicated region
      $region21: #{tpu_custom_call.1} parent=5 // pred_check
        %p233 = pneg %p232
      $region22: #{tpu_custom_call.1} parent=5 // pred_check_branch
        %235 = sbr.rel (%p233) target = $region24
      $region23: #{tpu_custom_call.1} parent=5 // pred_region
        // Predicated region
        $region25: #{tpu_custom_call.1} parent=23 // pred_check
          %p236 = pneg %p55
        $region26: #{tpu_custom_call.1} parent=23 // pred_check_branch
          %238 = sbr.rel (%p236) target = $region28
        $region27: #{tpu_custom_call.1} parent=23 // pred_region
          %s239 = sand.u32 %s45, 1
          %s240 = sand.u32 %s45, 1
          %s241 = smul.addr %s240, 8
          %s242 = scalar_lea.vmem [#allocation2], %s241
          %s243 = smul.addr %s21, 4
          %s244 = sadd.s32 %s23, %s243
          %s245 = smul.addr %s244, 4
          %s246 = scalar_lea.vmem %s0, %s245
          // Predicated region
          $region29: #{tpu_custom_call.1} parent=27 // pred_check
            _
          $region30: #{tpu_custom_call.1} parent=27 // pred_check_branch
            %248 = sbr.rel (0) target = $region32
          $region31: #{tpu_custom_call.1} parent=27 // pred_region
            // Predicated region
            $region33: #{tpu_custom_call.1} parent=31 // pred_check
              _
            $region34: #{tpu_custom_call.1} parent=31 // pred_check_branch
              %250 = sbr.rel target = $region36
            $region35: #{tpu_custom_call.1} parent=31 // pred_region
              // Predicated region
              $region48: #{tpu_custom_call.1} parent=35 // pred_check
                _
              $region49: #{tpu_custom_call.1} parent=35 // pred_check_branch
                %268 = sbr.rel (0) target = $region51
              $region50: #{tpu_custom_call.1} parent=35 // pred_region
                loop: start=0, step=1, limit=1
                $region52: #{tpu_custom_call.1} parent=50 // loop_pre_header
                  _
                $region53: #{tpu_custom_call.1} parent=50 // loop_header
                  %s270 = sphi 0, %s274
                  %p271 = scmp.ge.s32.totalorder %s270, 1
                  %s275 = sphi %s246, %s246
                  %s276 = sphi %s242, %s242
                $region54: #{tpu_custom_call.1} parent=50 // loop_header_branch
                  %273 = sbr.rel (%p271) target = $region58
                $region55: #{tpu_custom_call.1} parent=50 // loop_body
                  _
                $region56: #{tpu_custom_call.1} parent=50 // loop_footer
                  %s274 = sadd.s32 1, %s270
                $region57: #{tpu_custom_call.1} parent=50 // loop_footer_branch
                  %269 = sbr.rel target = $region53
                $region58: #{tpu_custom_call.1} parent=50 // loop_exit
                  _
                %s278 = ssub.s32 16, 1
                loop: start=0, step=1, limit=1
                $region59: #{tpu_custom_call.1} parent=50 // loop_pre_header
                  _
                $region60: #{tpu_custom_call.1} parent=50 // loop_header
                  %s280 = sphi 0, %s284
                  %p281 = scmp.ge.s32.totalorder %s280, 1
                  %s285 = sphi %s246, %s246
                  %s286 = sphi %s242, %s242
                $region61: #{tpu_custom_call.1} parent=50 // loop_header_branch
                  %283 = sbr.rel (%p281) target = $region65
                $region62: #{tpu_custom_call.1} parent=50 // loop_body
                  %v287 = vld [vmem:[%s285] sm:%s278]
                  %288 = vst [vmem:[%s286] sm:%s278] %v287
                  %v289 = vld [vmem:[%s285 + $0x8] sm:%s278]
                  %290 = vst [vmem:[%s286 + $0x4] sm:%s278] %v289
                $region63: #{tpu_custom_call.1} parent=50 // loop_footer
                  %s284 = sadd.s32 1, %s280
                $region64: #{tpu_custom_call.1} parent=50 // loop_footer_branch
                  %279 = sbr.rel target = $region60
                $region65: #{tpu_custom_call.1} parent=50 // loop_exit
                  _
              $region51: #{tpu_custom_call.1} parent=35 // pred_fallthru
                _
            $region36: #{tpu_custom_call.1} parent=31 // pred_fallthru
              _
            // Predicated region
            $region37: #{tpu_custom_call.1} parent=31 // pred_check
              _
            $region38: #{tpu_custom_call.1} parent=31 // pred_check_branch
              %252 = sbr.rel (0) target = $region40
            $region39: #{tpu_custom_call.1} parent=31 // pred_region
              %s254 = ssub.s32 16, 1
              loop: start=0, step=1, limit=1
              $region41: #{tpu_custom_call.1} parent=39 // loop_pre_header
                _
              $region42: #{tpu_custom_call.1} parent=39 // loop_header
                %s256 = sphi 0, %s260
                %p257 = scmp.ge.s32.totalorder %s256, 1
                %s261 = sphi %s246, %s246
                %s262 = sphi %s242, %s242
              $region43: #{tpu_custom_call.1} parent=39 // loop_header_branch
                %259 = sbr.rel (%p257) target = $region47
              $region44: #{tpu_custom_call.1} parent=39 // loop_body
                %v263 = vld [vmem:[%s261] sm:%s254]
                %264 = vst [vmem:[%s262] sm:%s254] %v263
                %v265 = vld [vmem:[%s261 + $0x8] sm:%s254]
                %266 = vst [vmem:[%s262 + $0x4] sm:%s254] %v265
              $region45: #{tpu_custom_call.1} parent=39 // loop_footer
                %s260 = sadd.s32 1, %s256
              $region46: #{tpu_custom_call.1} parent=39 // loop_footer_branch
                %255 = sbr.rel target = $region42
              $region47: #{tpu_custom_call.1} parent=39 // loop_exit
                _
            $region40: #{tpu_custom_call.1} parent=31 // pred_fallthru
              _
          $region32: #{tpu_custom_call.1} parent=27 // pred_fallthru
            _
          %291 = vnop
        $region28: #{tpu_custom_call.1} parent=23 // pred_fallthru
          _
        // Predicated region
        $region66: #{tpu_custom_call.1} parent=23 // pred_check
          %p292 = pneg %p83
        $region67: #{tpu_custom_call.1} parent=23 // pred_check_branch
          %294 = sbr.rel (%p292) target = $region69
        $region68: #{tpu_custom_call.1} parent=23 // pred_region
          %p295 = scmp.lt.s32.totalorder %s21, 1
          %s296 = scalar_select %p295, %s21, 1
          %p297 = scmp.lt.s32.totalorder %s23, 1
          %s298 = scalar_select %p297, %s23, 1
          %s299 = smul.addr %s298, 2
          %s300 = smul.addr %s296, 4
          %s301 = sadd.s32 %s299, %s300
          %s302 = smul.addr %s301, 4
          %s303 = scalar_lea.vmem %s1, %s302
        $region69: #{tpu_custom_call.1} parent=23 // pred_fallthru
          _
        // Predicated region
        $region70: #{tpu_custom_call.1} parent=23 // pred_check
          %p304 = pneg %p163
        $region71: #{tpu_custom_call.1} parent=23 // pred_check_branch
          %306 = sbr.rel (%p304) target = $region73
        $region72: #{tpu_custom_call.1} parent=23 // pred_region
          %p307 = scmp.lt.s32.totalorder %s21, 1
          %s308 = scalar_select %p307, %s21, 1
          %p309 = scmp.lt.s32.totalorder %s23, 1
          %s310 = scalar_select %p309, %s23, 1
          %s311 = smul.addr %s308, 2
          %s312 = sadd.s32 %s310, %s311
          %s313 = scalar_lea.vmem %s4, %s312
        $region73: #{tpu_custom_call.1} parent=23 // pred_fallthru
          _
      $region24: #{tpu_custom_call.1} parent=5 // pred_fallthru
        _
      %p314 = scmp.le.s32.totalorder 1, %s14
      %p315 = scmp.lt.s32.totalorder %s14, 5
      %p316 = pnand %p314, %p315
      %p317 = pneg %p316
      // Predicated region
      $region74: #{tpu_custom_call.1} parent=5 // pred_check
        _
      $region75: #{tpu_custom_call.1} parent=5 // pred_check_branch
        %319 = sbr.rel (%p316) target = $region77
      $region76: #{tpu_custom_call.1} parent=5 // pred_region
        %s320 = ssub.s32 %s14, 1
        %s321 = sand.u32 %s48, 1
        %s322 = sand.u32 %s48, 1
        %s323 = smul.addr %s322, 8
        %s324 = scalar_lea.vmem [#allocation2], %s323
        // Predicated region
        $region78: #{tpu_custom_call.1} parent=76 // pred_check
          %p325 = pneg %p61
        $region79: #{tpu_custom_call.1} parent=76 // pred_check_branch
          %327 = sbr.rel (%p325) target = $region81
        $region80: #{tpu_custom_call.1} parent=76 // pred_region
          _
        $region81: #{tpu_custom_call.1} parent=76 // pred_fallthru
          _
        %s328 = sand.u32 %s48, 1
        %s329 = sand.u32 %s48, 1
        %s330 = smul.addr %s329, 8
        %s331 = scalar_lea.vmem [#allocation2], %s330
        %p332 = pneg %p61
        %p333 = pneg %p58
        %p334 = scmp.lt.s32.totalorder %s24, 1
        %s335 = scalar_select %p334, %s24, 1
        %p336 = scmp.lt.s32.totalorder %s26, 1
        %s337 = scalar_select %p336, %s26, 1
        %s338 = smul.addr %s337, 2
        %s339 = smul.addr %s335, 4
        %s340 = sadd.s32 %s338, %s339
        %s341 = smul.addr %s340, 4
        %s342 = scalar_lea.vmem %s1, %s341
        %p343 = pneg %p89
        %p344 = pneg %p86
        %s345 = smul.u32 2, %s25
        %p346 = scmp.lt.s32.totalorder %s345, 1
        %s347 = scalar_select %p346, %s345, 1
        %s348 = smul.addr %s347, 4
        %s349 = scalar_lea.vmem %s2, %s348
        %p350 = pneg %p115
        %p351 = pneg %p112
        %s352 = smul.u32 2, %s25
        %p353 = scmp.lt.s32.totalorder %s352, 1
        %s354 = scalar_select %p353, %s352, 1
        %s355 = smul.addr %s354, 8
        %s356 = scalar_lea.vmem %s3, %s355
        %p357 = pneg %p141
        %p358 = pneg %p138
        %p359 = scmp.lt.s32.totalorder %s24, 1
        %s360 = scalar_select %p359, %s24, 1
        %p361 = scmp.lt.s32.totalorder %s26, 1
        %s362 = scalar_select %p361, %s26, 1
        %s363 = smul.addr %s360, 2
        %s364 = sadd.s32 %s362, %s363
        %s365 = scalar_lea.vmem %s4, %s364
        %p366 = pneg %p169
        %p367 = pneg %p166
        %p368 = pneg %p199
        %p369 = pneg %p196
        %s370 = sand.u32 %s186, 1
        %s371 = scalar_lea.sflag [#allocation4], %s370
        %s372 = sand.u32 %s186, 1
        %s373 = smul.addr %s372, 16
        %s374 = scalar_lea.vmem [#allocation3], %s373
        %p375 = scmp.lt.s32.totalorder %s24, 1
        %s376 = scalar_select %p375, %s24, 1
        %p377 = scmp.lt.s32.totalorder %s26, 1
        %s378 = scalar_select %p377, %s26, 1
        %s379 = smul.addr %s378, 2
        %s380 = smul.addr %s376, 4
        %s381 = sadd.s32 %s379, %s380
        %s382 = smul.addr %s381, 4
        %s383 = scalar_lea.vmem %s1, %s382
        %s384 = smul.u32 2, %s25
        %p385 = scmp.lt.s32.totalorder %s384, 1
        %s386 = scalar_select %p385, %s384, 1
        %s387 = smul.addr %s386, 4
        %s388 = scalar_lea.vmem %s2, %s387
        %s389 = smul.u32 2, %s25
        %s390 = smul.u32 2, %s25
        %p391 = scmp.lt.s32.totalorder %s390, 1
        %s392 = scalar_select %p391, %s390, 1
        %s393 = smul.addr %s392, 8
        %s394 = scalar_lea.vmem %s3, %s393
        %s395 = smul.u32 2, %s25
        %p396 = scmp.lt.s32.totalorder %s24, 1
        %s397 = scalar_select %p396, %s24, 1
        %p398 = scmp.lt.s32.totalorder %s26, 1
        %s399 = scalar_select %p398, %s26, 1
        %s400 = smul.addr %s397, 2
        %s401 = sadd.s32 %s399, %s400
        %s402 = scalar_lea.vmem %s4, %s401
        %s403 = smul.u32 2, %s25
        %v405 = vld [vmem:[%s324] sm:$0xf]
        %v406 = vld [vmem:[%s324 + $0x4] sm:$0xf]
        %v407 = vld [vmem:[%s383] sm:$0xf]
        %v408 = vld [vmem:[%s383 + $0x4] sm:$0xf]
        %v411 = vunpack.c.l.b16 %v407
        %v412 = vunpack.c.l.b16 %v408
        %v413 = vpack.c.b16 %v412, %v411
        %v416 = vunpack.c.l.b16 %v405
        %v417 = vunpack.c.l.b16 %v406
        %v418 = vpack.c.b16 %v417, %v416
        %419 = vrot.lane.b32.xlu0 %v418, 1
        %v420 = vpop.permute.xlu0 %419
        %vm421 = vcmask 7168
        %v424 = vsel %vm421, %v413, %v420
        %v426 = vsel %vm421, %v420, %v413
        %429 = vrot.lane.b32.xlu0 %v424, 127
        %v430 = vpop.permute.xlu0 %429
        %431 = vrot.lane.b32.xlu0 %v426, 127
        %v432 = vpop.permute.xlu0 %431
        %vm433 = vcmask 1039360
        %v434 = vsel %vm433, %v430, %v432
        %436 = vrot.lane.b32.xlu0 %v424, 126
        %v437 = vpop.permute.xlu0 %436
        %438 = vrot.lane.b32.xlu0 %v426, 126
        %v439 = vpop.permute.xlu0 %438
        %vm440 = vcmask 1031168
        %v441 = vsel %vm440, %v437, %v439
        %v443 = vld [vmem:[%s388] sm:$0xf]
        %v444 = vld [vmem:[%s388 + $0x4] sm:$0xf]
        %v445 = vld [vmem:[%s394] sm:$0xff]
        %v446 = vld [vmem:[%s394 + $0x8] sm:$0xff]
        %448 = vset.pattern.permute.xlu0 0
        %449 = vperm.xlu0 %448, %v445
        %v450 = vpop.permute.xlu0 %449
        %453 = vset.pattern.permute.xlu0 0
        %454 = vperm.xlu0 %453, %v446
        %v455 = vpop.permute.xlu0 %454
        %v459 = vunpack.c.l.b16 %v443
        %v460 = vunpack.c.l.b16 %v444
        %v461 = vpack.c.b16 %v460, %v459
        %vm462 = vcmask 392192
        %v464 = vsel %vm462, %v461, 0
        %466 = vmatpush.bf16.msra.mxu0 0
        %467 = vmatpush.bf16.msra.mxu0 0
        %468 = vmatpush.bf16.msra.mxu0 0
        %469 = vmatpush.bf16.msra.mxu0 0
        %470 = vmatpush.bf16.msra.mxu0 0
        %471 = vmatpush.bf16.msra.mxu0 %v441
        %472 = vmatpush.bf16.msra.mxu0 %v434
        %473 = vmatpush.bf16.msra.mxu0 %v424
        %474 = vmatmul.bf16.gmra.mxu0 %v464
        %v475 = vpop.f32.mrf.mxu0
        %v476 = vadd.f32 %v450, %v475
        %v477 = vpop.f32.mrf.mxu0
        %v478 = vadd.f32 %v455, %v477
        %479 = vdwg.mxu0
        %v480 = vld [vmem:[%s402] sm:$0x1]
        %v482 = vperm.slane %v480, 0
        %v484 = vmul.f32 %v476, %v482
        %v485 = vmul.f32 %v478, %v482
        %486 = vst [vmem:[%s374] sm:$0xff] %v484
        %487 = vst [vmem:[%s374 + $0x8] sm:$0xff] %v485
        %s488 = sand.u32 %s186, 1
        %s489 = scalar_lea.sflag [#allocation4], %s488
        %s490 = sand.u32 %s186, 1
        %s491 = smul.addr %s490, 16
        %s492 = scalar_lea.vmem [#allocation3], %s491
        // Predicated region
        $region82: #{tpu_custom_call.1} parent=76 // pred_check
          %p493 = pneg %p196
        $region83: #{tpu_custom_call.1} parent=76 // pred_check_branch
          %495 = sbr.rel (%p493) target = $region85
        $region84: #{tpu_custom_call.1} parent=76 // pred_region
          %s496 = smul.u32 2, %s25
          %498 = vsyncadd %s489, 0
          %s499 = smul.addr %s496, 2
          %s500 = sadd.s32 %s26, %s499
          %s501 = smul.addr %s24, 4
          %s502 = sadd.s32 %s500, %s501
          %s503 = smul.addr %s502, 8
          %s504 = scalar_lea.hbm %s5, %s503
          %s505 = sshll.u32 %s492, 4
          %s506 = int_to_ptr.vmem [resolvable:$true] %s505
          %s507 = sshll.u32 %s504, 4
          %s508 = int_to_ptr.hbm [resolvable:$true] %s507
          %513 = dma.vmem_to_hbm [thread:$0]  %s506, 256, %s508, %s489, 128, 256, 8
        $region85: #{tpu_custom_call.1} parent=76 // pred_fallthru
          _
      $region77: #{tpu_custom_call.1} parent=5 // pred_fallthru
        _
      %p514 = scmp.le.s32.totalorder 2, %s14
      // Predicated region
      $region86: #{tpu_custom_call.1} parent=5 // pred_check
        %p515 = pneg %p514
      $region87: #{tpu_custom_call.1} parent=5 // pred_check_branch
        %517 = sbr.rel (%p515) target = $region89
      $region88: #{tpu_custom_call.1} parent=5 // pred_region
        %s518 = ssub.s32 %s14, 2
        // Predicated region
        $region90: #{tpu_custom_call.1} parent=88 // pred_check
          %p519 = pneg %p202
        $region91: #{tpu_custom_call.1} parent=88 // pred_check_branch
          %521 = sbr.rel (%p519) target = $region93
        $region92: #{tpu_custom_call.1} parent=88 // pred_region
          %s522 = sand.u32 %s187, 1
          %s523 = scalar_lea.sflag [#allocation4], %s522
          %s524 = sand.u32 %s187, 1
          %s525 = smul.addr %s524, 16
          %s526 = scalar_lea.vmem [#allocation3], %s525
          %528 = dma.done %s523, 256
        $region93: #{tpu_custom_call.1} parent=88 // pred_fallthru
          _
      $region89: #{tpu_custom_call.1} parent=5 // pred_fallthru
        _
    $region6: #{tpu_custom_call.1} parent=1 // loop_footer
      %s18 = sadd.s32 1, %s14
    $region7: #{tpu_custom_call.1} parent=1 // loop_footer_branch
      %13 = sbr.rel target = $region3
    $region8: #{tpu_custom_call.1} parent=1 // loop_exit
      _
    %529 = vsyncpa [#allocation4], 1
    %s530 = scalar_lea.sflag [#allocation4], 1
    %531 = vsyncpa %s530, 1

</llo_original>
